<compile_context>
chip_gen: v6e
topology: v6e:2x2x1
jax: 0.10.0
libtpu: 0.0.40
codegen_flags: <defaults>
</compile_context>

<pallas_src>
import functools

import jax
import jax.numpy as jnp
from jax.experimental import pallas as pl
from jax.experimental.pallas import tpu as pltpu

LANES = 128
SUBLANES = 8


def _sublane_multiple(dtype) -> int:
    # (8,128) tiles for 32-bit, (16,128) for 16-bit, (32,128) for 8-bit dtypes.
    bits = jnp.dtype(dtype).itemsize * 8
    return max(SUBLANES, 256 // bits)


def _l1_partial_kernel(sr_ref, hr_ref, out_ref, *, rows, row_tile, need_mask):
    """Accumulates sum(|SR - HR|) into an (8, 128) partial-sum output."""
    i = pl.program_id(0)
    last = pl.num_programs(0) - 1
    groups = row_tile // SUBLANES

    @pl.when(i == 0)
    def _():
        out_ref[...] = jnp.zeros_like(out_ref)

    # Upcast in-kernel (inputs stay in native dtype in HBM; halves HBM traffic
    # for bf16 inputs).
    diff = jnp.abs(
        sr_ref[...].astype(jnp.float32) - hr_ref[...].astype(jnp.float32)
    )

    if need_mask:
        # Ragged tail: only the final block contains rows past `rows` (the
        # trailing part of a partial block is never DMA'd and holds undefined
        # VMEM data), so only there do we pay for the iota + compare + where.
        @pl.when(i == last)
        def _():
            row_ids = i * row_tile + jax.lax.broadcasted_iota(
                jnp.int32, (row_tile, LANES), 0
            )
            masked = jnp.where(row_ids < rows, diff, 0.0)
            out_ref[...] += masked.reshape(groups, SUBLANES, LANES).sum(axis=0)

        @pl.when(i != last)
        def _():
            out_ref[...] += diff.reshape(groups, SUBLANES, LANES).sum(axis=0)
    else:
        out_ref[...] += diff.reshape(groups, SUBLANES, LANES).sum(axis=0)


def _l1_partial_sums(sr2d, hr2d, rows, row_tile):
    """Pallas call over the lane-dense (rows, 128) slab -> (8, 128) partials."""
    sub = max(_sublane_multiple(sr2d.dtype), _sublane_multiple(hr2d.dtype))
    # Cap the tile at the (sublane-rounded) row count so tiny inputs don't
    # allocate oversized VMEM blocks; keep it a multiple of the native dtype's
    # sublane packing (8 for f32, 16 for bf16, 32 for int8/fp8).
    rt = min(int(row_tile), pl.cdiv(rows, sub) * sub)
    rt = max(sub, (rt // sub) * sub)

    n_blocks = pl.cdiv(rows, rt)
    need_mask = (rows % rt) != 0

    kernel = functools.partial(
        _l1_partial_kernel, rows=rows, row_tile=rt, need_mask=need_mask
    )

    return pl.pallas_call(
        kernel,
        out_shape=jax.ShapeDtypeStruct((SUBLANES, LANES), jnp.float32),
        grid_spec=pltpu.PrefetchScalarGridSpec(
            num_scalar_prefetch=0,
            grid=(n_blocks,),
            in_specs=[
                pl.BlockSpec((rt, LANES), lambda i: (i, 0)),
                pl.BlockSpec((rt, LANES), lambda i: (i, 0)),
            ],
            # Same block index across the reduction axis -> the (8, 128)
            # partial-sum output stays resident in VMEM (acts as accumulator).
            out_specs=pl.BlockSpec((SUBLANES, LANES), lambda i: (0, 0)),
        ),
        compiler_params=pltpu.CompilerParams(
            # Single reduction axis: accumulator resident across the grid.
            dimension_semantics=("arbitrary",),
            # 2 inputs x 2 pipeline buffers x (rt x 128 x itemsize) plus small
            # vector temporaries; comfortably inside 32 MiB on v5e/v6e/v7x.
            vmem_limit_bytes=32 * 1024 * 1024,
        ),
    )(sr2d, hr2d)


def l1_loss_pallas(sr, hr, *, row_tile=4096):
    """Mean absolute error over all elements, like torch.nn.L1Loss()(SR, HR)."""
    assert sr.shape == hr.shape, "SR and HR must have the same shape"
    n_elems = sr.size

    sr_flat = sr.reshape(-1)
    hr_flat = hr.reshape(-1)

    # Split into a 128-aligned prefix (kernel) + a <=127-element tail (tiny jnp
    # reduction). This avoids jnp.pad's full extra HBM round trip of both
    # inputs on unaligned sizes.
    rem = n_elems % LANES
    n_aligned = n_elems - rem

    if rem:
        tail = jnp.sum(
            jnp.abs(
                sr_flat[n_aligned:].astype(jnp.float32)
                - hr_flat[n_aligned:].astype(jnp.float32)
            )
        )
    else:
        tail = jnp.float32(0.0)

    if n_aligned == 0:
        total = tail
    else:
        rows = n_aligned // LANES
        sr2d = sr_flat[:n_aligned].reshape(rows, LANES)
        hr2d = hr_flat[:n_aligned].reshape(rows, LANES)
        partials = _l1_partial_sums(sr2d, hr2d, rows, row_tile)
        # Final 1024-element cross-lane reduce done once, outside the kernel.
        total = jnp.sum(partials, dtype=jnp.float32) + tail

    # Mean over the true element count, matching torch.nn.L1Loss().
    return (total / jnp.float32(n_elems)).astype(jnp.float32)


if __name__ == "__main__":
    key = jax.random.PRNGKey(0)
    k1, k2, k3, k4 = jax.random.split(key, 4)

    # Small SR/HR pair (NCHW), matching the module's forward(SR, HR).
    SR = jax.random.normal(k1, (2, 4, 16, 16), dtype=jnp.float32)
    HR = jax.random.normal(k2, (2, 4, 16, 16), dtype=jnp.float32)

    loss = l1_loss_pallas(SR, HR)
    jax.block_until_ready(loss)
    ref = jnp.mean(jnp.abs(SR - HR))
    assert jnp.allclose(loss, ref, rtol=1e-5, atol=1e-6), (loss, ref)

    # Also exercise the unaligned path (prefix kernel + tail) and the in-kernel
    # ragged-row mask.
    SR2 = jax.random.normal(k3, (1, 3, 300, 300), dtype=jnp.float32)
    HR2 = jax.random.normal(k4, (1, 3, 300, 300), dtype=jnp.float32)
    loss2 = l1_loss_pallas(SR2, HR2)
    jax.block_until_ready(loss2)
    ref2 = jnp.mean(jnp.abs(SR2 - HR2))
    assert jnp.allclose(loss2, ref2, rtol=1e-5, atol=1e-6), (loss2, ref2)

    print("KERNEL_OK")
</pallas_src>

<mosaic_0001>
module attributes {stable_mosaic.version = 11 : i64} {
  func.func @_l1_partial_kernel(%arg0: i32, %arg1: memref<16x128xf32, #tpu.memory_space<vmem>>, %arg2: memref<16x128xf32, #tpu.memory_space<vmem>>, %arg3: memref<8x128xf32, #tpu.memory_space<vmem>>) attributes {dimension_semantics = [#tpu.dimension_semantics<arbitrary>], iteration_bounds = array<i64: 1>, scalar_prefetch = 0 : i64, scratch_operands = 0 : i64, tpu.core_type = #tpu.core_type<tc>, window_params = [{transform_indices = @transform_0, window_bounds = array<i64: 16, 128>}, {transform_indices = @transform_1, window_bounds = array<i64: 16, 128>}, {pipeline_mode = #tpu.pipeline_mode<synchronous>, transform_indices = @transform_2, window_bounds = array<i64: 8, 128>}]} {
    %c0_i32 = arith.constant 0 : i32
    %0 = arith.cmpi eq, %arg0, %c0_i32 : i32
    %1 = arith.extui %0 : i1 to i32
    %c0_i32_0 = arith.constant 0 : i32
    %2 = arith.cmpi ne, %1, %c0_i32_0 : i32
    scf.if %2 {
      %cst_8 = arith.constant 0.000000e+00 : f32
      %12 = vector.broadcast %cst_8 : f32 to vector<8x128xf32>
      %c0_9 = arith.constant 0 : index
      %c0_10 = arith.constant 0 : index
      %13 = vector.load %arg3[%c0_9, %c0_10] : memref<8x128xf32, #tpu.memory_space<vmem>>, vector<8x128xf32>
      tpu.vector_store %arg3[%c0_9, %c0_10], %12 {strides = array<i32>} : memref<8x128xf32, #tpu.memory_space<vmem>>, vector<8x128xf32>,
    } else {
    }
    %c0 = arith.constant 0 : index
    %c0_1 = arith.constant 0 : index
    %3 = vector.load %arg1[%c0, %c0_1] : memref<16x128xf32, #tpu.memory_space<vmem>>, vector<16x128xf32>
    %c0_2 = arith.constant 0 : index
    %c0_3 = arith.constant 0 : index
    %4 = vector.load %arg2[%c0_2, %c0_3] : memref<16x128xf32, #tpu.memory_space<vmem>>, vector<16x128xf32>
    %5 = arith.subf %3, %4 : vector<16x128xf32>
    %6 = math.absf %5 : vector<16x128xf32>
    %c0_4 = arith.constant 0 : index
    %c0_5 = arith.constant 0 : index
    %7 = vector.load %arg3[%c0_4, %c0_5] : memref<8x128xf32, #tpu.memory_space<vmem>>, vector<8x128xf32>
    %8 = vector.shape_cast %6 : vector<16x128xf32> to vector<2x8x128xf32>
    %cst = arith.constant dense<0.000000e+00> : vector<8x128xf32>
    %9 = vector.multi_reduction <add>, %8, %cst [0] : vector<2x8x128xf32> to vector<8x128xf32>
    %10 = arith.addf %7, %9 : vector<8x128xf32>
    %c0_6 = arith.constant 0 : index
    %c0_7 = arith.constant 0 : index
    %11 = vector.load %arg3[%c0_6, %c0_7] : memref<8x128xf32, #tpu.memory_space<vmem>>, vector<8x128xf32>
    tpu.vector_store %arg3[%c0_6, %c0_7], %10 {strides = array<i32>} : memref<8x128xf32, #tpu.memory_space<vmem>>, vector<8x128xf32>,
    return
  }
  func.func @transform_0(%arg0: i32) -> (i32, i32) {
    %c0_i32 = arith.constant 0 : i32
    %c0_i32_0 = arith.constant 0 : i32
    return %arg0, %c0_i32 : i32, i32
  }
  func.func @transform_1(%arg0: i32) -> (i32, i32) {
    %c0_i32 = arith.constant 0 : i32
    %c0_i32_0 = arith.constant 0 : i32
    return %arg0, %c0_i32 : i32, i32
  }
  func.func @transform_2(%arg0: i32) -> (i32, i32) {
    %c0_i32 = arith.constant 0 : i32
    %c0_i32_0 = arith.constant 0 : i32
    %c0_i32_1 = arith.constant 0 : i32
    return %c0_i32, %c0_i32_0 : i32, i32
  }
}

</mosaic_0001>

<llo_original>
// kernel: tpu_custom_call.1
$region0: #{tpu_custom_call.1}
  #allocation0 [shape = 'u32[]', space=smem, size = 0x4, offset = 0x4, fixed_abs, tag = 'smem constant byte address 0x4 - core index']
  #allocation1 [shape = 'u32[144,128]{1,0:T(1,128)}', space=vmem, size = 0x12000, scoped, tag = 'internal scratch']
  %s0 = inlined_call_operand.hbm [shape: f32[16,128], index: 0, kind: input, shape index: {}]
  %s1 = inlined_call_operand.hbm [shape: f32[16,128], index: 1, kind: input, shape index: {}]
  %s2 = inlined_call_operand.hbm [shape: f32[8,128], index: 2, kind: output, shape index: {}]
  %s3 = sld [smem:[#allocation0]]
  $region30: #{tpu_custom_call.1} parent=0
    _
  %s5 = ssub.s32 1, %s3
  %s6 = scalar_select 0, %s5, %s3
  $region1: #{tpu_custom_call.1} parent=0
    #allocation2 [shape = 'u8[8192]{0}', space=vmem, size = 0x2000, scoped, tag = 'input window, operand 0, single buffered']
    #allocation3 [shape = 's32[1]{0}', space=sflag, size = 0x4, scoped, tag = 'scoped memory for tpu_custom_call.1']
    #allocation4 [shape = 's32[1]{0}', space=sflag, size = 0x4, scoped, tag = 'scoped memory for tpu_custom_call.1']
    #allocation5 [shape = 'u8[8192]{0}', space=vmem, size = 0x2000, scoped, tag = 'input window, operand 1, single buffered']
    #allocation6 [shape = 's32[1]{0}', space=sflag, size = 0x4, scoped, tag = 'scoped memory for tpu_custom_call.1']
    #allocation7 [shape = 'u8[4096]{0}', space=vmem, size = 0x1000, scoped, tag = 'output window, operand 0, single buffered']
    %7 = vsyncpa [#allocation3], 0
    %8 = vsyncpa [#allocation6], 0
    %9 = vsyncpa [#allocation4], 0
    // Predicated region
    $region2: #{tpu_custom_call.1} parent=1 // pred_check
      _
    $region3: #{tpu_custom_call.1} parent=1 // pred_check_branch
      %11 = sbr.rel (0) target = $region5
    $region4: #{tpu_custom_call.1} parent=1 // pred_region
      %s13 = ssub.s32 256, 256
      %14 = vsyncadd [#allocation3], %s13
      %s15 = sshll.u32 [#allocation2], 4
      %s16 = int_to_ptr.vmem [resolvable:$true] %s15
      %21 = dma.hbm_to_vmem [thread:$0]  %s0, 256, %s16, [#allocation3], 128, 128, 8
    $region5: #{tpu_custom_call.1} parent=1 // pred_fallthru
      _
    // Predicated region
    $region6: #{tpu_custom_call.1} parent=1 // pred_check
      _
    $region7: #{tpu_custom_call.1} parent=1 // pred_check_branch
      %23 = sbr.rel (0) target = $region9
    $region8: #{tpu_custom_call.1} parent=1 // pred_region
      %s25 = ssub.s32 256, 256
      %26 = vsyncadd [#allocation6], %s25
      %s27 = sshll.u32 [#allocation5], 4
      %s28 = int_to_ptr.vmem [resolvable:$true] %s27
      %33 = dma.hbm_to_vmem [thread:$0]  %s1, 256, %s28, [#allocation6], 128, 128, 8
    $region9: #{tpu_custom_call.1} parent=1 // pred_fallthru
      _
    // Predicated region
    $region10: #{tpu_custom_call.1} parent=1 // pred_check
      _
    $region11: #{tpu_custom_call.1} parent=1 // pred_check_branch
      %35 = sbr.rel (0) target = $region13
    $region12: #{tpu_custom_call.1} parent=1 // pred_region
      %36 = dma.done [#allocation3], 256
    $region13: #{tpu_custom_call.1} parent=1 // pred_fallthru
      _
    // Predicated region
    $region14: #{tpu_custom_call.1} parent=1 // pred_check
      _
    $region15: #{tpu_custom_call.1} parent=1 // pred_check_branch
      %38 = sbr.rel (0) target = $region17
    $region16: #{tpu_custom_call.1} parent=1 // pred_region
      %39 = dma.done [#allocation6], 256
    $region17: #{tpu_custom_call.1} parent=1 // pred_fallthru
      _
    %p40 = scmp.eq.s32.totalorder 0, 0
    // Predicated region
    $region18: #{tpu_custom_call.1} parent=1 // pred_check
      %p41 = pneg %p40
    $region19: #{tpu_custom_call.1} parent=1 // pred_check_branch
      %43 = sbr.rel (%p41) target = $region21
    $region20: #{tpu_custom_call.1} parent=1 // pred_region
      %44 = vst [vmem:[#allocation7] sm:$0xff] 0.0
    $region21: #{tpu_custom_call.1} parent=1 // pred_fallthru
      _
    %v45 = vld [vmem:[#allocation2] sm:$0xff]
    %v46 = vld [vmem:[#allocation2 + $0x8] sm:$0xff]
    %v47 = vld [vmem:[#allocation5] sm:$0xff]
    %v48 = vld [vmem:[#allocation5 + $0x8] sm:$0xff]
    %v49 = vsub.f32 %v45, %v47
    %v50 = vsub.f32 %v46, %v48
    %v51 = vand.u32 2147483647, %v49
    %v52 = vand.u32 2147483647, %v50
    %v53 = vld [vmem:[#allocation7] sm:$0xff]
    %v54 = vadd.f32 %v51, %v52
    %v55 = vadd.f32 %v53, %v54
    %56 = vst [vmem:[#allocation7] sm:$0xff] %v55
    // Predicated region
    $region22: #{tpu_custom_call.1} parent=1 // pred_check
      _
    $region23: #{tpu_custom_call.1} parent=1 // pred_check_branch
      %58 = sbr.rel (0) target = $region25
    $region24: #{tpu_custom_call.1} parent=1 // pred_region
      %s60 = ssub.s32 128, 128
      %61 = vsyncadd [#allocation4], %s60
      %s63 = sshll.u32 [#allocation7], 4
      %s64 = int_to_ptr.vmem [resolvable:$true] %s63
      %66 = dma.vmem_to_hbm [thread:$0]  %s64, 128, %s2, [#allocation4]
    $region25: #{tpu_custom_call.1} parent=1 // pred_fallthru
      _
    // Predicated region
    $region26: #{tpu_custom_call.1} parent=1 // pred_check
      _
    $region27: #{tpu_custom_call.1} parent=1 // pred_check_branch
      %68 = sbr.rel (0) target = $region29
    $region28: #{tpu_custom_call.1} parent=1 // pred_region
      %69 = dma.done [#allocation4], 128
    $region29: #{tpu_custom_call.1} parent=1 // pred_fallthru
      _
    %70 = vsyncpa [#allocation3], 1
    %71 = vsyncpa [#allocation6], 1
    %72 = vsyncpa [#allocation4], 1

</llo_original>
